<compile_context>
chip_gen: v7x
topology: tpu7x:2x2x1
jax: 0.10.0
libtpu: 0.0.40
codegen_flags: <defaults>
</compile_context>

<pallas_src>
import functools

import jax
import jax.numpy as jnp
from jax import lax
from jax.experimental import pallas as pl
from jax.experimental.pallas import tpu as pltpu


def _vmem_capacity_bytes(default=64 * 1024 * 1024):
    """Per-core VMEM capacity; falls back to the smallest current part (v7x)."""
    try:
        info = pltpu.get_tpu_info()
        cap = getattr(info, "vmem_capacity_bytes", None)
        if cap:
            return int(cap)
    except Exception:
        pass
    return int(default)


def _focal_loss_kernel(logits_ref, targets_ref, out_ref, acc_ref, *,
                       alpha, gamma, n_valid):
    # logits_ref : (TILE_N, C) native dtype in VMEM
    # targets_ref: (TILE_N, 1) int32 in VMEM
    # out_ref    : (8, 128)   f32 per-core partial-sum block (written on last step)
    # acc_ref    : (TILE_N, 1) f32 VMEM vector accumulator (per core, persists)
    core = pl.program_id(0)           # "parallel" axis (megacore split)
    i = pl.program_id(1)              # "arbitrary" reduction axis
    inner = pl.num_programs(1)
    tn, c = logits_ref.shape

    @pl.when(i == 0)
    def _():
        acc_ref[...] = jnp.zeros_like(acc_ref)

    x = logits_ref[...].astype(jnp.float32)          # (TILE_N, C)
    tgt = targets_ref[...]                           # (TILE_N, 1) int32

    # Valid-row mask from the *logical* block index (core*inner + i), so both
    # the padded tail and clamped duplicate blocks contribute exactly zero.
    row0 = (core * inner + i) * tn
    row_ids = row0 + lax.broadcasted_iota(jnp.int32, (tn, 1), 0)
    valid = row_ids < n_valid                                         # (TILE_N, 1)

    # Stable per-row softmax pieces.  All reductions are per-row (axis=-1), so
    # garbage in padded rows stays in those rows; no input mask needed.
    m = jnp.max(x, axis=-1, keepdims=True)           # (TILE_N, 1)
    z = x - m
    ez = jnp.exp(z)                                  # (TILE_N, C)
    sum_ez = jnp.sum(ez, axis=-1, keepdims=True)     # (TILE_N, 1)

    # One-hot gather of the target column: (1, C) iota broadcast against the
    # (TILE_N, 1) targets (no per-step (TILE_N, C) iota materialization).
    class_ids = lax.broadcasted_iota(jnp.int32, (1, c), 1)
    onehot = (class_ids == tgt).astype(jnp.float32)                  # (TILE_N, C)
    z_t = jnp.sum(z * onehot, axis=-1, keepdims=True)                # (TILE_N, 1)

    ce = jnp.log(sum_ez) - z_t          # -log softmax[target]
    pt = jnp.exp(-ce)                   # softmax[target], same as the PyTorch ref

    one_minus_pt = jnp.maximum(1.0 - pt, 0.0)        # clamp fp round-off
    g = float(gamma)
    if g.is_integer() and 0 <= int(g) <= 8:
        # Integer gamma (default 2) -> plain VPU multiplies, no float pow.
        w = jnp.ones_like(one_minus_pt)
        for _ in range(int(g)):
            w = w * one_minus_pt
    else:
        w = one_minus_pt ** jnp.float32(g)

    focal = jnp.float32(alpha) * w * ce              # (TILE_N, 1)
    focal = jnp.where(valid, focal, 0.0)

    # Pure elementwise accumulate; cross-sublane reduce only in the epilogue.
    acc_ref[...] = acc_ref[...] + focal

    @pl.when(i == inner - 1)
    def _():
        total = jnp.sum(acc_ref[...])
        out_ref[...] = jnp.broadcast_to(total, out_ref.shape).astype(jnp.float32)


def focal_loss(logits, targets, alpha=1.0, gamma=2.0, tile_n=None):
    """Mean focal loss, matching PyTorch FocalLoss(reduction='mean').

    logits:  (N, C) float array.  Pass it in its NATIVE training dtype — bf16
             logits are DMA'd as bf16 and upcast to f32 in VMEM, so pre-upcasting
             to f32 in the caller only doubles HBM traffic.
    targets: (N,) integer class indices in [0, C).
    Returns a scalar float32.
    """
    n, c = logits.shape
    itemsize = jnp.dtype(logits.dtype).itemsize
    targets2d = targets.astype(jnp.int32).reshape(n, 1)

    vmem_cap = _vmem_capacity_bytes()
    vmem_budget = int(vmem_cap * 0.6)          # headroom for compiler scratch

    # Per-row VMEM cost: 2x double-buffered logits row, 2x 128-lane-padded
    # int32 targets row, 1x 128-lane-padded f32 accumulator row.
    per_row_bytes = 2 * c * itemsize + 2 * 128 * 4 + 128 * 4
    if tile_n is None:
        tile_n = vmem_budget // per_row_bytes
        tile_n = min(tile_n, 8192)
    tile_n = int(max(8, min(int(tile_n), ((n + 7) // 8) * 8)))
    tile_n = max(8, (tile_n // 8) * 8)

    num_row_blocks = pl.cdiv(n, tile_n)
    num_cores = 2 if num_row_blocks >= 2 else 1    # v7x has 2 TCs; harmless on 1-TC parts
    inner = pl.cdiv(num_row_blocks, num_cores)

    if num_cores * inner == num_row_blocks:
        def row_block(j, i):
            return j * inner + i
    else:
        last_block = num_row_blocks - 1

        def row_block(j, i):
            # Clamp the rectangular-grid overshoot of the last core onto the
            # last real block; its rows are >= n and fully masked in-kernel.
            return jnp.minimum(j * inner + i, last_block)

    kernel = functools.partial(
        _focal_loss_kernel,
        alpha=float(alpha), gamma=float(gamma), n_valid=n,
    )

    cost = pl.CostEstimate(
        flops=8 * n * c,
        transcendentals=n * c + n,
        bytes_accessed=n * c * itemsize + n * 4 + num_cores * 8 * 128 * 4,
    )

    block_bytes = tile_n * per_row_bytes + 2 * 8 * 128 * 4
    cp_kwargs = dict(dimension_semantics=("parallel", "arbitrary"))
    if block_bytes > 12 * 1024 * 1024:
        cp_kwargs["vmem_limit_bytes"] = int(min(0.85 * vmem_cap, block_bytes * 1.5))
    compiler_params = pltpu.CompilerParams(**cp_kwargs)

    partials = pl.pallas_call(
        kernel,
        out_shape=jax.ShapeDtypeStruct((num_cores * 8, 128), jnp.float32),
        grid=(num_cores, inner),
        in_specs=[
            pl.BlockSpec((tile_n, c), lambda j, i: (row_block(j, i), 0)),
            pl.BlockSpec((tile_n, 1), lambda j, i: (row_block(j, i), 0)),
        ],
        out_specs=pl.BlockSpec((8, 128), lambda j, i: (j, 0)),
        scratch_shapes=[pltpu.VMEM((tile_n, 1), jnp.float32)],
        compiler_params=compiler_params,
        cost_estimate=cost,
    )(logits, targets2d)

    # Each core fills its (8,128) block with its partial sum; pick one lane each.
    return jnp.sum(partials[::8, 0]) / jnp.float32(n)


def _reference_focal_loss(logits, targets, alpha=1.0, gamma=2.0):
    logp = jax.nn.log_softmax(logits.astype(jnp.float32), axis=-1)
    ce = -jnp.take_along_axis(logp, targets[:, None].astype(jnp.int32), axis=-1)[:, 0]
    pt = jnp.exp(-ce)
    return jnp.mean(alpha * (1.0 - pt) ** gamma * ce)


if __name__ == "__main__":
    key = jax.random.PRNGKey(0)
    k1, k2 = jax.random.split(key)

    # N deliberately not a multiple of 8 so the masked-tail path is exercised.
    N, C = 20, 16
    logits = jax.random.normal(k1, (N, C), dtype=jnp.float32) * 2.0
    targets = jax.random.randint(k2, (N,), 0, C, dtype=jnp.int32)
    ref = _reference_focal_loss(logits, targets, alpha=1.0, gamma=2.0)

    # Auto-sized tile: single row-block, single partial.
    loss = jax.block_until_ready(focal_loss(logits, targets, alpha=1.0, gamma=2.0))
    assert jnp.allclose(loss, ref, atol=1e-5, rtol=1e-5), (loss, ref)

    # Forced small tile: 3 row-blocks split across the 2-partial "parallel"
    # axis -> exercises the clamped duplicate block and the masked tail.
    loss_tiled = jax.block_until_ready(focal_loss(logits, targets, tile_n=8))
    assert jnp.allclose(loss_tiled, ref, atol=1e-5, rtol=1e-5), (loss_tiled, ref)

    # Native-bf16 wire path (no caller upcast).
    logits_bf16 = logits.astype(jnp.bfloat16)
    loss_bf16 = jax.block_until_ready(focal_loss(logits_bf16, targets))
    ref_bf16 = _reference_focal_loss(logits_bf16.astype(jnp.float32), targets)
    assert jnp.allclose(loss_bf16, ref_bf16, atol=1e-2, rtol=1e-2), (loss_bf16, ref_bf16)

    print("KERNEL_OK")
</pallas_src>

<mosaic_0001>
module attributes {stable_mosaic.version = 11 : i64} {
  func.func @_focal_loss_kernel(%arg0: i32, %arg1: i32, %arg2: memref<24x16xf32, #tpu.memory_space<vmem>>, %arg3: memref<24x1xi32, #tpu.memory_space<vmem>>, %arg4: memref<8x128xf32, #tpu.memory_space<vmem>>, %arg5: memref<24x1xf32, #tpu.memory_space<vmem>>) attributes {dimension_semantics = [#tpu.dimension_semantics<parallel>, #tpu.dimension_semantics<arbitrary>], iteration_bounds = array<i64: 1, 1>, scalar_prefetch = 0 : i64, scratch_operands = 1 : i64, tpu.core_type = #tpu.core_type<tc>, window_params = [{transform_indices = @transform_0, window_bounds = array<i64: 24, 16>}, {transform_indices = @transform_1, window_bounds = array<i64: 24, 1>}, {transform_indices = @transform_2, window_bounds = array<i64: 8, 128>}]} {
    %c0_i32 = arith.constant 0 : i32
    %0 = arith.cmpi eq, %arg1, %c0_i32 : i32
    %1 = arith.extui %0 : i1 to i32
    %c0_i32_0 = arith.constant 0 : i32
    %2 = arith.cmpi ne, %1, %c0_i32_0 : i32
    scf.if %2 {
      %cst_18 = arith.constant 0.000000e+00 : f32
      %52 = vector.broadcast %cst_18 : f32 to vector<24x1xf32>
      %c0_19 = arith.constant 0 : index
      %c0_20 = arith.constant 0 : index
      %53 = vector.load %arg5[%c0_19, %c0_20] : memref<24x1xf32, #tpu.memory_space<vmem>>, vector<24x1xf32>
      tpu.vector_store %arg5[%c0_19, %c0_20], %52 {strides = array<i32>} : memref<24x1xf32, #tpu.memory_space<vmem>>, vector<24x1xf32>,
    } else {
    }
    %c0 = arith.constant 0 : index
    %c0_1 = arith.constant 0 : index
    %3 = vector.load %arg2[%c0, %c0_1] : memref<24x16xf32, #tpu.memory_space<vmem>>, vector<24x16xf32>
    %c0_2 = arith.constant 0 : index
    %c0_3 = arith.constant 0 : index
    %4 = vector.load %arg3[%c0_2, %c0_3] : memref<24x1xi32, #tpu.memory_space<vmem>>, vector<24x1xi32>
    %c1_i32 = arith.constant 1 : i32
    %5 = arith.muli %arg0, %c1_i32 : i32
    %6 = arith.addi %5, %arg1 : i32
    %c24_i32 = arith.constant 24 : i32
    %7 = arith.muli %6, %c24_i32 : i32
    %8 = tpu.iota {dimensions = array<i32: 0>} : vector<24x1xi32>
    %9 = vector.broadcast %7 : i32 to vector<24x1xi32>
    %10 = arith.addi %9, %8 : vector<24x1xi32>
    %c20_i32 = arith.constant 20 : i32
    %11 = vector.broadcast %c20_i32 : i32 to vector<24x1xi32>
    %12 = arith.cmpi slt, %10, %11 : vector<24x1xi32>
    %cst = arith.constant dense<0xFF800000> : vector<24xf32>
    %13 = vector.multi_reduction <maximumf>, %3, %cst [1] : vector<24x16xf32> to vector<24xf32>
    %14 = vector.shape_cast %13 : vector<24xf32> to vector<24x1xf32>
    %15 = vector.broadcast %14 : vector<24x1xf32> to vector<24x16xf32>
    %16 = arith.subf %3, %15 : vector<24x16xf32>
    %17 = math.exp %16 : vector<24x16xf32>
    %cst_4 = arith.constant dense<0.000000e+00> : vector<24xf32>
    %18 = vector.multi_reduction <add>, %17, %cst_4 [1] : vector<24x16xf32> to vector<24xf32>
    %19 = vector.shape_cast %18 : vector<24xf32> to vector<24x1xf32>
    %20 = tpu.iota {dimensions = array<i32: 1>} : vector<1x16xi32>
    %21 = vector.broadcast %20 : vector<1x16xi32> to vector<24x16xi32>
    %22 = vector.broadcast %4 : vector<24x1xi32> to vector<24x16xi32>
    %23 = arith.cmpi eq, %21, %22 : vector<24x16xi32>
    %24 = arith.extui %23 : vector<24x16xi1> to vector<24x16xi32>
    %25 = arith.sitofp %24 : vector<24x16xi32> to vector<24x16xf32>
    %26 = arith.mulf %16, %25 : vector<24x16xf32>
    %cst_5 = arith.constant dense<0.000000e+00> : vector<24xf32>
    %27 = vector.multi_reduction <add>, %26, %cst_5 [1] : vector<24x16xf32> to vector<24xf32>
    %28 = vector.shape_cast %27 : vector<24xf32> to vector<24x1xf32>
    %29 = math.log %19 : vector<24x1xf32>
    %30 = arith.subf %29, %28 : vector<24x1xf32>
    %cst_6 = arith.constant 0.000000e+00 : f32
    %31 = vector.broadcast %cst_6 : f32 to vector<24x1xf32>
    %32 = arith.subf %31, %30 : vector<24x1xf32>
    %33 = math.exp %32 : vector<24x1xf32>
    %cst_7 = arith.constant 1.000000e+00 : f32
    %34 = vector.broadcast %cst_7 : f32 to vector<24x1xf32>
    %35 = arith.subf %34, %33 : vector<24x1xf32>
    %cst_8 = arith.constant 0.000000e+00 : f32
    %36 = vector.broadcast %cst_8 : f32 to vector<24x1xf32>
    %37 = arith.maximumf %35, %36 : vector<24x1xf32>
    %cst_9 = arith.constant 1.000000e+00 : f32
    %38 = vector.broadcast %cst_9 : f32 to vector<24x1xf32>
    %39 = arith.mulf %38, %37 : vector<24x1xf32>
    %40 = arith.mulf %39, %37 : vector<24x1xf32>
    %cst_10 = arith.constant 1.000000e+00 : f32
    %41 = vector.broadcast %cst_10 : f32 to vector<24x1xf32>
    %42 = arith.mulf %41, %40 : vector<24x1xf32>
    %43 = arith.mulf %42, %30 : vector<24x1xf32>
    %cst_11 = arith.constant 0.000000e+00 : f32
    %44 = vector.broadcast %cst_11 : f32 to vector<24x1xf32>
    %45 = arith.select %12, %43, %44 : vector<24x1xi1>, vector<24x1xf32>
    %c0_12 = arith.constant 0 : index
    %c0_13 = arith.constant 0 : index
    %46 = vector.load %arg5[%c0_12, %c0_13] : memref<24x1xf32, #tpu.memory_space<vmem>>, vector<24x1xf32>
    %47 = arith.addf %46, %45 : vector<24x1xf32>
    %c0_14 = arith.constant 0 : index
    %c0_15 = arith.constant 0 : index
    %48 = vector.load %arg5[%c0_14, %c0_15] : memref<24x1xf32, #tpu.memory_space<vmem>>, vector<24x1xf32>
    tpu.vector_store %arg5[%c0_14, %c0_15], %47 {strides = array<i32>} : memref<24x1xf32, #tpu.memory_space<vmem>>, vector<24x1xf32>,
    %c0_i32_16 = arith.constant 0 : i32
    %49 = arith.cmpi eq, %arg1, %c0_i32_16 : i32
    %50 = arith.extui %49 : i1 to i32
    %c0_i32_17 = arith.constant 0 : i32
    %51 = arith.cmpi ne, %50, %c0_i32_17 : i32
    scf.if %51 {
      %c0_18 = arith.constant 0 : index
      %c0_19 = arith.constant 0 : index
      %52 = vector.load %arg5[%c0_18, %c0_19] : memref<24x1xf32, #tpu.memory_space<vmem>>, vector<24x1xf32>
      %53 = vector.shape_cast %52 : vector<24x1xf32> to vector<1x24x1xf32>
      %cst_20 = arith.constant dense<0.000000e+00> : vector<1xf32>
      %54 = vector.multi_reduction <add>, %53, %cst_20 [1, 2] : vector<1x24x1xf32> to vector<1xf32>
      %55 = vector.shape_cast %54 : vector<1xf32> to vector<1x1x1xf32>
      %56 = vector.extract %55[0, 0, 0] : f32 from vector<1x1x1xf32>
      %57 = vector.broadcast %56 : f32 to vector<8x128xf32>
      %c0_21 = arith.constant 0 : index
      %c0_22 = arith.constant 0 : index
      %58 = vector.load %arg4[%c0_21, %c0_22] : memref<8x128xf32, #tpu.memory_space<vmem>>, vector<8x128xf32>
      tpu.vector_store %arg4[%c0_21, %c0_22], %57 {strides = array<i32>} : memref<8x128xf32, #tpu.memory_space<vmem>>, vector<8x128xf32>,
    } else {
    }
    return
  }
  func.func @transform_0(%arg0: i32, %arg1: i32) -> (i32, i32) {
    %c1_i32 = arith.constant 1 : i32
    %0 = arith.muli %arg0, %c1_i32 : i32
    %1 = arith.addi %0, %arg1 : i32
    %c0_i32 = arith.constant 0 : i32
    %c0_i32_0 = arith.constant 0 : i32
    return %1, %c0_i32 : i32, i32
  }
  func.func @transform_1(%arg0: i32, %arg1: i32) -> (i32, i32) {
    %c1_i32 = arith.constant 1 : i32
    %0 = arith.muli %arg0, %c1_i32 : i32
    %1 = arith.addi %0, %arg1 : i32
    %c0_i32 = arith.constant 0 : i32
    %c0_i32_0 = arith.constant 0 : i32
    return %1, %c0_i32 : i32, i32
  }
  func.func @transform_2(%arg0: i32, %arg1: i32) -> (i32, i32) {
    %c0_i32 = arith.constant 0 : i32
    %c0_i32_0 = arith.constant 0 : i32
    return %arg0, %c0_i32 : i32, i32
  }
}

</mosaic_0001>

<llo_original>
// kernel: tpu_custom_call.1
$region0: #{tpu_custom_call.1}
  #allocation0 [shape = 'u32[]', space=smem, size = 0x4, offset = 0x4, fixed_abs, tag = 'smem constant byte address 0x4 - core index']
  #allocation1 [shape = 'u32[144,128]{1,0:T(1,128)}', space=vmem, size = 0x12000, scoped, tag = 'internal scratch']
  #allocation2 [shape = 'f32[24,1]{1,0:T(8,128)}', space=vmem, size = 0x3000, scoped, tag = 'scratch operand']
  %s0 = inlined_call_operand.vmem [shape: f32[20,16], index: 0, kind: input, shape index: {}]
  %s1 = inlined_call_operand.vmem [shape: s32[20,1], index: 1, kind: input, shape index: {}]
  %s2 = inlined_call_operand.hbm [shape: f32[8,128], index: 2, kind: output, shape index: {}]
  %s3 = sld [smem:[#allocation0]]
  $region26: #{tpu_custom_call.1} parent=0
    _
  %s5 = ssub.s32 1, %s3
  %s6 = scalar_select 0, %s5, %s3
  $region1: #{tpu_custom_call.1} parent=0
    #allocation3 [shape = 'u8[4096]{0}', space=vmem, size = 0x1000, scoped, tag = 'output window, operand 0, single buffered']
    #allocation4 [shape = 's32[1]{0}', space=sflag, size = 0x4, scoped, tag = 'scoped memory for tpu_custom_call.1']
    %7 = vsyncpa [#allocation4], 0
    // Predicated region
    $region2: #{tpu_custom_call.1} parent=1 // pred_check
      _
    $region3: #{tpu_custom_call.1} parent=1 // pred_check_branch
      %9 = sbr.rel (0) target = $region5
    $region4: #{tpu_custom_call.1} parent=1 // pred_region
      %s10 = sadd.s32 0, 0
      %s11 = smul.u32 3, %s10
      %p12 = scmp.lt.s32.totalorder %s11, 2
      %s13 = scalar_select %p12, %s11, 2
      %s14 = smul.addr %s13, 8
      %s15 = scalar_lea.vmem %s0, %s14
      %s16 = sadd.s32 0, 0
      %s17 = smul.u32 3, %s16
    $region5: #{tpu_custom_call.1} parent=1 // pred_fallthru
      _
    // Predicated region
    $region6: #{tpu_custom_call.1} parent=1 // pred_check
      _
    $region7: #{tpu_custom_call.1} parent=1 // pred_check_branch
      %19 = sbr.rel (0) target = $region9
    $region8: #{tpu_custom_call.1} parent=1 // pred_region
      %s20 = sadd.s32 0, 0
      %s21 = smul.u32 3, %s20
      %p22 = scmp.lt.s32.totalorder %s21, 2
      %s23 = scalar_select %p22, %s21, 2
      %s24 = smul.addr %s23, 8
      %s25 = scalar_lea.vmem %s1, %s24
      %s26 = sadd.s32 0, 0
      %s27 = smul.u32 3, %s26
    $region9: #{tpu_custom_call.1} parent=1 // pred_fallthru
      _
    %s28 = sadd.s32 0, 0
    %s29 = smul.u32 3, %s28
    %p30 = scmp.lt.s32.totalorder %s29, 2
    %s31 = scalar_select %p30, %s29, 2
    %s32 = smul.addr %s31, 8
    %s33 = scalar_lea.vmem %s0, %s32
    %s34 = sadd.s32 0, 0
    %s35 = smul.u32 3, %s34
    %p36 = scmp.lt.s32.totalorder %s35, 2
    %s37 = scalar_select %p36, %s35, 2
    %s38 = smul.addr %s37, 8
    %s39 = scalar_lea.vmem %s1, %s38
    %s40 = sadd.s32 0, 0
    %s41 = smul.u32 3, %s40
    %p42 = scmp.lt.s32.totalorder %s41, 2
    %s43 = scalar_select %p42, %s41, 2
    %s44 = smul.addr %s43, 8
    %s45 = scalar_lea.vmem %s0, %s44
    %s46 = sadd.s32 0, 0
    %s47 = smul.u32 3, %s46
    %s48 = sadd.s32 0, 0
    %s49 = smul.u32 3, %s48
    %p50 = scmp.lt.s32.totalorder %s49, 2
    %s51 = scalar_select %p50, %s49, 2
    %s52 = smul.addr %s51, 8
    %s53 = scalar_lea.vmem %s1, %s52
    %s54 = sadd.s32 0, 0
    %s55 = smul.u32 3, %s54
    %p56 = scmp.eq.s32.totalorder 0, 0
    // Predicated region
    $region10: #{tpu_custom_call.1} parent=1 // pred_check
      %p57 = pneg %p56
    $region11: #{tpu_custom_call.1} parent=1 // pred_check_branch
      %59 = sbr.rel (%p57) target = $region13
    $region12: #{tpu_custom_call.1} parent=1 // pred_region
      %vm60 = vcmask 7168
      %61 = vst.msk [vmem:[#allocation2] sm:$0xff] %vm60, 0.0
      %62 = vst.msk [vmem:[#allocation2 + $0x8] sm:$0xff] %vm60, 0.0
      %63 = vst.msk [vmem:[#allocation2 + $0x10] sm:$0xff] %vm60, 0.0
    $region13: #{tpu_custom_call.1} parent=1 // pred_fallthru
      _
    %v64 = vld [vmem:[%s45] sm:$0xff]
    %v65 = vld [vmem:[%s45 + $0x8] sm:$0xff]
    %v66 = vld [vmem:[%s45 + $0x10] sm:$0xff]
    %v67 = vld [vmem:[%s53] sm:$0xff]
    %v68 = vld [vmem:[%s53 + $0x8] sm:$0xff]
    %v69 = vld [vmem:[%s53 + $0x10] sm:$0xff]
    %s70 = sadd.s32 0, 0
    %s71 = smul.u32 %s70, 24
    %v72 = vlaneseq
    %v73 = vshrl.u32 %v72, 7
    %v74 = vadd.s32 %v73, 8
    %v75 = vadd.s32 %v73, 16
    %v76 = vstv %s71
    %v77 = vadd.s32 %v76, %v73
    %v78 = vadd.s32 %v76, %v74
    %v79 = vadd.s32 %v76, %v75
    %vm80 = vcmp.lt.s32.totalorder %v77, 20
    %vm81 = vcmp.lt.s32.totalorder %v78, 20
    %vm82 = vcmp.lt.s32.totalorder %v79, 20
    %vm83 = vcmask 130048
    %v84 = vsel %vm83, %v64, -inf
    %85 = vmax.xlane.f32.xlu0 %v84
    %v86 = vpop.xlane.xlu0 %85
    %v87 = vsel %vm83, %v65, -inf
    %88 = vmax.xlane.f32.xlu0 %v87
    %v89 = vpop.xlane.xlu0 %88
    %v90 = vsel %vm83, %v66, -inf
    %91 = vmax.xlane.f32.xlu0 %v90
    %v92 = vpop.xlane.xlu0 %91
    %v93 = vsub.f32 %v64, %v86
    %v94 = vsub.f32 %v65, %v89
    %v95 = vsub.f32 %v66, %v92
    %v96 = vmul.f32 %v93, 1.442695
    %v97 = vpow.pop %v96
    %v98 = vmul.f32 %v94, 1.442695
    %v99 = vpow.pop %v98
    %v100 = vmul.f32 %v95, 1.442695
    %v101 = vpow.pop %v100
    %v102 = vsel %vm83, %v97, 0.0
    %103 = vadd.xlane.f32.xlu0 %v102
    %v104 = vpop.xlane.xlu0 %103
    %v105 = vsel %vm83, %v99, 0.0
    %106 = vadd.xlane.f32.xlu0 %v105
    %v107 = vpop.xlane.xlu0 %106
    %v108 = vsel %vm83, %v101, 0.0
    %109 = vadd.xlane.f32.xlu0 %v108
    %v110 = vpop.xlane.xlu0 %109
    %v111 = vlaneseq
    %v112 = vand.u32 %v111, 127
    %113 = vset.pattern.permute.xlu0 0
    %114 = vperm.xlu0 %113, %v67
    %v115 = vpop.permute.xlu0 %114
    %116 = vset.pattern.permute.xlu0 0
    %117 = vperm.xlu0 %116, %v68
    %v118 = vpop.permute.xlu0 %117
    %119 = vset.pattern.permute.xlu0 0
    %120 = vperm.xlu0 %119, %v69
    %v121 = vpop.permute.xlu0 %120
    %vm122 = vcmp.eq.s32.totalorder %v112, %v115
    %vm123 = vcmp.eq.s32.totalorder %v112, %v118
    %vm124 = vcmp.eq.s32.totalorder %v112, %v121
    %v125 = vsel %vm122, 1, 0
    %v126 = vsel %vm123, 1, 0
    %v127 = vsel %vm124, 1, 0
    %v128 = vcvt.s32.f32 %v125
    %v129 = vcvt.s32.f32 %v126
    %v130 = vcvt.s32.f32 %v127
    %v131 = vmul.f32 %v93, %v128
    %v132 = vmul.f32 %v94, %v129
    %v133 = vmul.f32 %v95, %v130
    %v134 = vsel %vm83, %v131, 0.0
    %135 = vadd.xlane.f32.xlu0 %v134
    %v136 = vpop.xlane.xlu0 %135
    %v137 = vsel %vm83, %v132, 0.0
    %138 = vadd.xlane.f32.xlu0 %v137
    %v139 = vpop.xlane.xlu0 %138
    %v140 = vsel %vm83, %v133, 0.0
    %141 = vadd.xlane.f32.xlu0 %v140
    %v142 = vpop.xlane.xlu0 %141
    %v143 = vlog2.pop %v104
    %v144 = vmul.f32 %v143, 0.6931472
    %v145 = vlog2.pop %v107
    %v146 = vmul.f32 %v145, 0.6931472
    %v147 = vlog2.pop %v110
    %v148 = vmul.f32 %v147, 0.6931472
    %v149 = vsub.f32 %v144, %v136
    %v150 = vsub.f32 %v146, %v139
    %v151 = vsub.f32 %v148, %v142
    %v152 = vsub.f32 0.0, %v149
    %v153 = vsub.f32 0.0, %v150
    %v154 = vsub.f32 0.0, %v151
    %v155 = vmul.f32 %v152, 1.442695
    %v156 = vpow.pop %v155
    %v157 = vmul.f32 %v153, 1.442695
    %v158 = vpow.pop %v157
    %v159 = vmul.f32 %v154, 1.442695
    %v160 = vpow.pop %v159
    %v161 = vsub.f32 1.0, %v156
    %v162 = vsub.f32 1.0, %v158
    %v163 = vsub.f32 1.0, %v160
    %v164 = vmax.f32 %v161, 0.0
    %v165 = vmax.f32 %v162, 0.0
    %v166 = vmax.f32 %v163, 0.0
    %v167 = vmul.f32 %v164, %v164
    %v168 = vmul.f32 %v165, %v165
    %v169 = vmul.f32 %v166, %v166
    %v170 = vmul.f32 %v167, %v149
    %v171 = vmul.f32 %v168, %v150
    %v172 = vmul.f32 %v169, %v151
    %v173 = vsel %vm80, %v170, 0.0
    %v174 = vsel %vm81, %v171, 0.0
    %v175 = vsel %vm82, %v172, 0.0
    %v176 = vld [vmem:[#allocation2] sm:$0xff]
    %v177 = vld [vmem:[#allocation2 + $0x8] sm:$0xff]
    %v178 = vld [vmem:[#allocation2 + $0x10] sm:$0xff]
    %v179 = vadd.f32 %v176, %v173
    %v180 = vadd.f32 %v177, %v174
    %v181 = vadd.f32 %v178, %v175
    %vm182 = vcmask 7168
    %183 = vst.msk [vmem:[#allocation2] sm:$0xff] %vm182, %v179
    %184 = vst.msk [vmem:[#allocation2 + $0x8] sm:$0xff] %vm182, %v180
    %185 = vst.msk [vmem:[#allocation2 + $0x10] sm:$0xff] %vm182, %v181
    // Predicated region
    $region14: #{tpu_custom_call.1} parent=1 // pred_check
      %p186 = pneg %p56
    $region15: #{tpu_custom_call.1} parent=1 // pred_check_branch
      %188 = sbr.rel (%p186) target = $region17
    $region16: #{tpu_custom_call.1} parent=1 // pred_region
      %v189 = vld [vmem:[#allocation2] sm:$0xff]
      %v190 = vld [vmem:[#allocation2 + $0x8] sm:$0xff]
      %v191 = vld [vmem:[#allocation2 + $0x10] sm:$0xff]
      %v192 = vsel %vm182, %v189, 0.0
      %v193 = vsel %vm182, %v190, 0.0
      %v194 = vadd.f32 %v192, %v193
      %v195 = vsel %vm182, %v191, 0.0
      %v196 = vadd.f32 %v194, %v195
      %197 = vadd.xlane.f32.xlu0 %v196
      %v198 = vpop.xlane.xlu0 %197
      %v199 = vrot.slane %v198, 4
      %v200 = vadd.f32 %v198, %v199
      %v201 = vrot.slane %v200, 2
      %v202 = vadd.f32 %v200, %v201
      %v203 = vrot.slane %v202, 1
      %v204 = vadd.f32 %v202, %v203
      %s205 = vtos %v204
      %v206 = vstv %s205
      %207 = vst [vmem:[#allocation3] sm:$0xff] %v206
    $region17: #{tpu_custom_call.1} parent=1 // pred_fallthru
      _
    // Predicated region
    $region18: #{tpu_custom_call.1} parent=1 // pred_check
      _
    $region19: #{tpu_custom_call.1} parent=1 // pred_check_branch
      %209 = sbr.rel (0) target = $region21
    $region20: #{tpu_custom_call.1} parent=1 // pred_region
      %s211 = ssub.s32 128, 128
      %212 = vsyncadd [#allocation4], %s211
      %s214 = sshll.u32 [#allocation3], 4
      %s215 = int_to_ptr.vmem [resolvable:$true] %s214
      %217 = dma.vmem_to_hbm [thread:$0]  %s215, 128, %s2, [#allocation4]
    $region21: #{tpu_custom_call.1} parent=1 // pred_fallthru
      _
    // Predicated region
    $region22: #{tpu_custom_call.1} parent=1 // pred_check
      _
    $region23: #{tpu_custom_call.1} parent=1 // pred_check_branch
      %219 = sbr.rel (0) target = $region25
    $region24: #{tpu_custom_call.1} parent=1 // pred_region
      %220 = dma.done [#allocation4], 128
    $region25: #{tpu_custom_call.1} parent=1 // pred_fallthru
      _
    %221 = vsyncpa [#allocation4], 1

</llo_original>
